<compile_context>
chip_gen: v6e
topology: v6e:2x2x1
jax: 0.10.0
libtpu: 0.0.40
codegen_flags: <defaults>
</compile_context>

<pallas_src>
import jax
import jax.numpy as jnp
from jax.experimental import pallas as pl
from jax.experimental.pallas import tpu as pltpu


def _round_up(x, m):
    return ((x + m - 1) // m) * m


def _pick_tile(m, cap=256):
    """Row tile: multiple of 16 (bf16 sublane tiling), capped, never the raw M fallback."""
    m16 = _round_up(max(int(m), 1), 16)
    tile = min(cap, m16)
    m_pad = _round_up(m16, tile)
    return tile, m_pad


# ----------------------------------------------------------------------------
# Pallas kernel 1: pairwise squared distances, tiled over rows.
# ----------------------------------------------------------------------------
def _dist_kernel(xr_ref, xc_ref, csq_ref, d_ref):
    xr = xr_ref[0]                                        # [TM, F]
    xc = xc_ref[0]                                        # [N,  F]
    row_sq = jnp.sum(xr * xr, axis=1, keepdims=True)      # [TM, 1]
    gram = jax.lax.dot_general(                           # [TM, N] = xr @ xc^T
        xr, xc, dimension_numbers=(((1,), (1,)), ((), ())),
        preferred_element_type=jnp.float32)
    d_ref[0] = row_sq + csq_ref[0] - 2.0 * gram


def pairwise_sq_dists(x, row_tile=256):
    """x: [B, N, F] f32 -> [B, N, N] squared euclidean distances."""
    B, N, F = x.shape
    TM, N_pad = _pick_tile(N, row_tile)
    x_rows = x if N_pad == N else jnp.pad(x, ((0, 0), (0, N_pad - N), (0, 0)))
    col_sq = jnp.sum(x * x, axis=2)[:, None, :]           # [B, 1, N] lane-dense
    d = pl.pallas_call(
        _dist_kernel,
        out_shape=jax.ShapeDtypeStruct((B, N_pad, N), jnp.float32),
        grid=(B, N_pad // TM),
        in_specs=[
            pl.BlockSpec((1, TM, F), lambda b, i: (b, i, 0)),
            pl.BlockSpec((1, N, F), lambda b, i: (b, 0, 0)),
            pl.BlockSpec((1, 1, N), lambda b, i: (b, 0, 0)),
        ],
        out_specs=pl.BlockSpec((1, TM, N), lambda b, i: (b, i, 0)),
        compiler_params=pltpu.CompilerParams(
            dimension_semantics=("parallel", "parallel"),
            vmem_limit_bytes=32 * 1024 * 1024),
    )(x_rows, x, col_sq)
    return d[:, :N, :]


# ----------------------------------------------------------------------------
# Pallas kernel 2: pointwise MLP (1x1 conv + folded BN + ReLU stack) + K-max.
#   x_self: [M_pad, F] bf16, x_diff: [K, M_pad, F] bf16, weights bf16, biases f32.
#   Layer 0 uses split weights (W_self, W_diff); the K axis is fused into the
#   matmul M dimension; the final max over K is a loop over sublane-aligned
#   row chunks; the output block is lane-dense (C padded to a 128 multiple).
# ----------------------------------------------------------------------------
def _edgeconv_mlp_kernel(*refs):
    xs_ref, xd_ref = refs[0], refs[1]
    out_ref = refs[-1]
    wb = refs[2:-1]
    K, tile, F = xd_ref.shape

    w_self = wb[0][...]                       # [F, C1] bf16
    w_diff = wb[1][...]                       # [F, C1] bf16
    b0 = wb[2][...]                           # [1, C1] f32

    xs = xs_ref[...]                          # [tile,   F] bf16
    xd = xd_ref[...].reshape(K * tile, F)     # [K*tile, F] bf16 (leading-dim merge)

    # Layer 0: the x_i half is identical across the K neighbors -> compute once.
    s = jnp.dot(xs, w_self, preferred_element_type=jnp.float32)       # [tile,   C1]
    d = jnp.dot(xd, w_diff, preferred_element_type=jnp.float32)       # [K*tile, C1]
    h = jnp.maximum(d + jnp.concatenate([s] * K, axis=0) + b0, 0.0)   # [K*tile, C1]

    # Remaining layers: one fused (K*tile, C) matmul each (bf16 in, f32 acc).
    rest = wb[3:]
    for l in range(len(rest) // 2):
        w = rest[2 * l][...]
        b = rest[2 * l + 1][...]
        h = jnp.dot(h.astype(w.dtype), w, preferred_element_type=jnp.float32) + b
        h = jnp.maximum(h, 0.0)

    # Max over the K neighbors: K sublane-aligned row chunks of `tile` rows.
    m = h[0:tile]
    for k in range(1, K):
        m = jnp.maximum(m, h[k * tile:(k + 1) * tile])
    out_ref[...] = m.astype(out_ref.dtype)


def edgeconv_mlp_max(x_self, x_diff, params, compute_dtype=jnp.bfloat16):
    """x_self: [M, F] f32; x_diff: [K, M, F] f32; params: [(w [Cin,Cout], b [1,Cout])]."""
    K, M, F = x_diff.shape
    c_out = params[-1][0].shape[1]
    c_pad = _round_up(c_out, 128)             # lane-dense output stores
    tile, M_pad = _pick_tile(M, 256)          # 256 cap is safe for v5e/v6e/v7x budgets

    if M_pad != M:
        x_self = jnp.pad(x_self, ((0, M_pad - M), (0, 0)))
        x_diff = jnp.pad(x_diff, ((0, 0), (0, M_pad - M), (0, 0)))
    x_self = x_self.astype(compute_dtype)
    x_diff = x_diff.astype(compute_dtype)

    # Pad the last layer's output channels to the lane-dense width (zeros -> ReLU -> 0).
    plist = list(params)
    if c_pad != c_out:
        wl, bl = plist[-1]
        plist[-1] = (jnp.pad(wl, ((0, 0), (0, c_pad - c_out))),
                     jnp.pad(bl, ((0, 0), (0, c_pad - c_out))))

    w0, b0 = plist[0]                          # w0: [2F, C1]
    args = [x_self, x_diff,
            w0[:F].astype(compute_dtype),      # W_self
            w0[F:].astype(compute_dtype),      # W_diff
            b0.astype(jnp.float32)]
    in_specs = [
        pl.BlockSpec((tile, F), lambda i: (i, 0)),
        pl.BlockSpec((K, tile, F), lambda i: (0, i, 0)),
        pl.BlockSpec((F, w0.shape[1]), lambda i: (0, 0)),
        pl.BlockSpec((F, w0.shape[1]), lambda i: (0, 0)),
        pl.BlockSpec(b0.shape, lambda i: (0, 0)),
    ]
    for w, b in plist[1:]:
        args += [w.astype(compute_dtype), b.astype(jnp.float32)]
        in_specs += [pl.BlockSpec(w.shape, lambda i: (0, 0)),
                     pl.BlockSpec(b.shape, lambda i: (0, 0))]

    out = pl.pallas_call(
        _edgeconv_mlp_kernel,
        out_shape=jax.ShapeDtypeStruct((M_pad, c_pad), jnp.float32),
        grid=(M_pad // tile,),
        in_specs=in_specs,
        out_specs=pl.BlockSpec((tile, c_pad), lambda i: (i, 0)),
        compiler_params=pltpu.CompilerParams(
            dimension_semantics=("parallel",),      # shards across v7x's 2 TCs
            vmem_limit_bytes=32 * 1024 * 1024),
    )(*args)
    return out[:M, :c_out]


# ----------------------------------------------------------------------------
# Glue: KNN graph + neighbor-major diff features (plain JAX).
# ----------------------------------------------------------------------------
def knn_indices(X, K):
    """X: [B, N, F] -> [B, N, K] indices of K nearest neighbors (self excluded)."""
    B, N, F = X.shape
    assert K + 1 <= N
    d = pairwise_sq_dists(X)                         # Pallas, [B, N, N]
    # TODO(synk): top-k selection has no clean Pallas equivalent; lax.top_k in JAX.
    _, idx = jax.lax.top_k(-d, K + 1)                # K+1 nearest incl. self
    return idx[:, :, 1:]                             # drop self (== torch sort[:,1:K+1])


def edgeconv_forward(X, params, K):
    """EdgeConv forward. X: [B, N, F] f32 -> [B, N, layers[-1]] f32."""
    B, N, F = X.shape
    idx = knn_indices(X, K)                          # [B, N, K]
    # Gather neighbors directly in neighbor-major layout [K, B, N, F] (no big transpose).
    # TODO(synk): an in-kernel scalar-prefetch gather (PrefetchScalarGridSpec) would
    #             avoid materializing x_diff in HBM; row gathers at F=3 have no clean
    #             portable Pallas lowering, so the gather stays in plain JAX.
    idx_t = jnp.transpose(idx, (0, 2, 1))            # [B, K, N] (tiny)
    nbrs = jax.vmap(lambda xb, ib: xb[ib], out_axes=1)(X, idx_t)   # [K, B, N, F]
    x_diff = (nbrs - X[None]).reshape(K, B * N, F)   # [K, M, F]
    x_self = X.reshape(B * N, F)                     # [M, F]
    out = edgeconv_mlp_max(x_self, x_diff, params)   # [M, c_out] (Pallas)
    return out.reshape(B, N, -1)


def ref_mlp_max(X, idx, params, compute_dtype=jnp.bfloat16):
    """Pure-JAX reference for the MLP + K-max hot path (same bf16 quantization)."""
    B, N, F = X.shape
    K = idx.shape[-1]
    nbr = jax.vmap(lambda xb, ib: xb[ib])(X, idx)                   # [B, N, K, F]
    x1 = jnp.broadcast_to(X[:, :, None, :], (B, N, K, F))
    h = jnp.concatenate([x1, nbr - x1], axis=3).reshape(B * N * K, 2 * F)
    for w, b in params:
        h = jnp.dot(h.astype(compute_dtype), w.astype(compute_dtype),
                    preferred_element_type=jnp.float32) + b
        h = jnp.maximum(h, 0.0)
    return h.reshape(B, N, K, -1).max(axis=2)


# ----------------------------------------------------------------------------
# Deterministic parameter init (Conv1d k=1 weights + BatchNorm folded to affine).
# ----------------------------------------------------------------------------
def init_params(key, layers):
    params = []
    c_in = 2 * layers[0]
    eps = 1e-5
    for c_out in layers[1:]:
        key, k1, k2, k3, k4, k5 = jax.random.split(key, 6)
        w = 0.1 * jax.random.normal(k1, (c_in, c_out), jnp.float32)   # Conv1d(k=1) weight
        b = 0.1 * jax.random.normal(k2, (c_out,), jnp.float32)        # Conv1d bias
        gamma = 1.0 + 0.1 * jax.random.normal(k3, (c_out,), jnp.float32)
        beta = 0.1 * jax.random.normal(k4, (c_out,), jnp.float32)
        running_mean = 0.1 * jax.random.normal(k5, (c_out,), jnp.float32)
        running_var = jnp.ones((c_out,), jnp.float32)
        scale = gamma / jnp.sqrt(running_var + eps)
        w_eff = w * scale[None, :]
        b_eff = (b - running_mean) * scale + beta
        params.append((w_eff, b_eff.reshape(1, c_out)))
        c_in = c_out
    return params


if __name__ == "__main__":
    layers = [3, 64, 64, 64]
    K = 3
    B, N, F = 2, 16, 3

    key = jax.random.PRNGKey(0)
    kx, kp = jax.random.split(key)
    X = jax.random.normal(kx, (B, N, F), dtype=jnp.float32)
    params = init_params(kp, layers)

    out = jax.block_until_ready(edgeconv_forward(X, params, K))
    assert out.shape == (B, N, layers[-1]), out.shape

    # check 1 (loose): Pallas pairwise-distance kernel vs plain-JAX f32 reference.
    # Loose tolerance covers possible reduced-precision f32 MXU defaults.
    d_pl = jax.block_until_ready(pairwise_sq_dists(X))
    sq = jnp.sum(X * X, axis=2)
    d_ref = sq[:, :, None] + sq[:, None, :] - 2.0 * jnp.einsum(
        "bnf,bmf->bnm", X, X, precision=jax.lax.Precision.HIGHEST)
    assert jnp.allclose(d_pl, d_ref, atol=2e-1, rtol=5e-2), \
        float(jnp.abs(d_pl - d_ref).max())

    # check 2 (tight): MLP + K-max hot path vs plain JAX using the same neighbor
    # indices and the same bf16 input/weight quantization (f32 accumulation).
    idx = knn_indices(X, K)
    ref = jax.block_until_ready(ref_mlp_max(X, idx, params))
    err = float(jnp.max(jnp.abs(out - ref)))
    assert err < 2e-3, err

    print("KERNEL_OK")
</pallas_src>

<mosaic_0001>
module attributes {stable_mosaic.version = 11 : i64} {
  func.func @_dist_kernel(%arg0: i32, %arg1: i32, %arg2: memref<1x16x3xf32, #tpu.memory_space<vmem>>, %arg3: memref<1x16x3xf32, #tpu.memory_space<vmem>>, %arg4: memref<1x1x16xf32, #tpu.memory_space<vmem>>, %arg5: memref<1x16x16xf32, #tpu.memory_space<vmem>>) attributes {dimension_semantics = [#tpu.dimension_semantics<parallel>, #tpu.dimension_semantics<parallel>], iteration_bounds = array<i64: 2, 1>, scalar_prefetch = 0 : i64, scratch_operands = 0 : i64, tpu.core_type = #tpu.core_type<tc>, window_params = [{transform_indices = @transform_0, window_bounds = array<i64: 1, 16, 3>}, {transform_indices = @transform_1, window_bounds = array<i64: 1, 16, 3>}, {transform_indices = @transform_2, window_bounds = array<i64: 1, 1, 16>}, {transform_indices = @transform_3, window_bounds = array<i64: 1, 16, 16>}]} {
    %c0 = arith.constant 0 : index
    %c0_0 = arith.constant 0 : index
    %c0_1 = arith.constant 0 : index
    %0 = vector.load %arg2[%c0, %c0_0, %c0_1] : memref<1x16x3xf32, #tpu.memory_space<vmem>>, vector<1x16x3xf32>
    %1 = vector.shape_cast %0 : vector<1x16x3xf32> to vector<16x3xf32>
    %c0_2 = arith.constant 0 : index
    %c0_3 = arith.constant 0 : index
    %c0_4 = arith.constant 0 : index
    %2 = vector.load %arg3[%c0_2, %c0_3, %c0_4] : memref<1x16x3xf32, #tpu.memory_space<vmem>>, vector<1x16x3xf32>
    %3 = vector.shape_cast %2 : vector<1x16x3xf32> to vector<16x3xf32>
    %4 = arith.mulf %1, %1 : vector<16x3xf32>
    %cst = arith.constant dense<0.000000e+00> : vector<16xf32>
    %5 = vector.multi_reduction <add>, %4, %cst [1] : vector<16x3xf32> to vector<16xf32>
    %6 = vector.shape_cast %5 : vector<16xf32> to vector<16x1xf32>
    %cst_5 = arith.constant dense<0.000000e+00> : vector<16x16xf32>
    %7 = tpu.matmul %1, %3, %cst_5 {dimension_numbers = #tpu.dot_dimension_numbers<[1], [1], [0], [0], [0, 0, 1, 0], [], []>} : vector<16x3xf32>, vector<16x3xf32>, vector<16x16xf32> -> vector<16x16xf32>
    %c0_6 = arith.constant 0 : index
    %c0_7 = arith.constant 0 : index
    %c0_8 = arith.constant 0 : index
    %8 = vector.load %arg4[%c0_6, %c0_7, %c0_8] : memref<1x1x16xf32, #tpu.memory_space<vmem>>, vector<1x1x16xf32>
    %9 = vector.shape_cast %8 : vector<1x1x16xf32> to vector<1x16xf32>
    %10 = vector.broadcast %6 : vector<16x1xf32> to vector<16x16xf32>
    %11 = vector.broadcast %9 : vector<1x16xf32> to vector<16x16xf32>
    %12 = arith.addf %10, %11 : vector<16x16xf32>
    %cst_9 = arith.constant 2.000000e+00 : f32
    %13 = vector.broadcast %cst_9 : f32 to vector<16x16xf32>
    %14 = arith.mulf %13, %7 : vector<16x16xf32>
    %15 = arith.subf %12, %14 : vector<16x16xf32>
    %c0_10 = arith.constant 0 : index
    %c0_11 = arith.constant 0 : index
    %c0_12 = arith.constant 0 : index
    %16 = vector.load %arg5[%c0_10, %c0_11, %c0_12] : memref<1x16x16xf32, #tpu.memory_space<vmem>>, vector<1x16x16xf32>
    %17 = vector.shape_cast %16 : vector<1x16x16xf32> to vector<16x16xf32>
    %18 = vector.shape_cast %15 : vector<16x16xf32> to vector<1x16x16xf32>
    tpu.vector_store %arg5[%c0_10, %c0_11, %c0_12], %18 {strides = array<i32>} : memref<1x16x16xf32, #tpu.memory_space<vmem>>, vector<1x16x16xf32>,
    return
  }
  func.func @transform_0(%arg0: i32, %arg1: i32) -> (i32, i32, i32) {
    %c0_i32 = arith.constant 0 : i32
    %c0_i32_0 = arith.constant 0 : i32
    return %arg0, %arg1, %c0_i32 : i32, i32, i32
  }
  func.func @transform_1(%arg0: i32, %arg1: i32) -> (i32, i32, i32) {
    %c0_i32 = arith.constant 0 : i32
    %c0_i32_0 = arith.constant 0 : i32
    %c0_i32_1 = arith.constant 0 : i32
    return %arg0, %c0_i32, %c0_i32_0 : i32, i32, i32
  }
  func.func @transform_2(%arg0: i32, %arg1: i32) -> (i32, i32, i32) {
    %c0_i32 = arith.constant 0 : i32
    %c0_i32_0 = arith.constant 0 : i32
    %c0_i32_1 = arith.constant 0 : i32
    return %arg0, %c0_i32, %c0_i32_0 : i32, i32, i32
  }
  func.func @transform_3(%arg0: i32, %arg1: i32) -> (i32, i32, i32) {
    %c0_i32 = arith.constant 0 : i32
    %c0_i32_0 = arith.constant 0 : i32
    return %arg0, %arg1, %c0_i32 : i32, i32, i32
  }
}

</mosaic_0001>

<llo_original>
// kernel: tpu_custom_call.1
$region0: #{tpu_custom_call.1}
  #allocation0 [shape = 'u32[]', space=smem, size = 0x4, offset = 0x4, fixed_abs, tag = 'smem constant byte address 0x4 - core index']
  #allocation1 [shape = 'u32[144,128]{1,0:T(1,128)}', space=vmem, size = 0x12000, scoped, tag = 'internal scratch']
  %s0 = inlined_call_operand.vmem [shape: f32[2,16,3], index: 0, kind: input, shape index: {}]
  %s1 = inlined_call_operand.vmem [shape: f32[2,16,3], index: 1, kind: input, shape index: {}]
  %s2 = inlined_call_operand.vmem [shape: f32[2,1,16], index: 2, kind: input, shape index: {}]
  %s3 = inlined_call_operand.hbm [shape: f32[2,16,16], index: 3, kind: output, shape index: {}]
  %s4 = sld [smem:[#allocation0]]
  $region45: #{tpu_custom_call.1} parent=0
    _
  %s6 = ssub.s32 1, %s4
  %s7 = scalar_select 0, %s6, %s4
  $region1: #{tpu_custom_call.1} parent=0
    #allocation2 [shape = 'u8[16384]{0}', space=vmem, size = 0x4000, scoped, tag = 'output window, operand 0']
    #allocation3 [shape = 's32[2]{0}', space=sflag, size = 0x8, scoped, tag = 'scoped memory for tpu_custom_call.1']
    %8 = vsyncpa [#allocation3], 0
    %s9 = scalar_lea.sflag [#allocation3], 1
    %10 = vsyncpa %s9, 0
    loop: start=0, step=1, limit=4
    $region2: #{tpu_custom_call.1} parent=1 // loop_pre_header
      _
    $region3: #{tpu_custom_call.1} parent=1 // loop_header
      %s12 = sphi 0, %s16
      %p13 = scmp.ge.s32.totalorder %s12, 4
      %s19 = sphi 0, %s31
      %s20 = sphi 0, %s27
      %s21 = sphi 0, %s19
      %s22 = sphi 0, %s20
      %s23 = sphi 0, %s21
      %s24 = sphi 0, %s22
      %s36 = sphi 0, %s38
      %s39 = sphi 0, %s36
      %s40 = sphi 0, %s39
      %s56 = sphi 0, %s40
      %s62 = sphi 0, %s64
      %s65 = sphi 0, %s62
      %s66 = sphi 0, %s65
      %s82 = sphi 0, %s66
      %s88 = sphi 0, %s90
      %s91 = sphi 0, %s88
      %s92 = sphi 0, %s91
      %s108 = sphi 0, %s92
      %s116 = sphi 0, %s118
      %s119 = sphi 0, %s116
      %s120 = sphi 0, %s119
      %s136 = sphi 0, %s120
    $region4: #{tpu_custom_call.1} parent=1 // loop_header_branch
      %15 = sbr.rel (%p13) target = $region8
    $region5: #{tpu_custom_call.1} parent=1 // loop_body
      %s17 = ssub.s32 %s12, 1
      %s18 = ssub.s32 %s12, 2
      %s25 = sadd.s32 1, %s20
      %p26 = scmp.ge.s32.totalorder %s25, 1
      %s27 = scalar_select %p26, 0, %s25
      %s28 = sadd.s32 1, %s19
      %s29 = scalar_select %p26, %s28, %s19
      %p30 = scmp.ge.s32.totalorder %s29, 2
      %s31 = scalar_select %p30, 0, %s29
      %s32 = ssub.s32 %s19, %s31
      %s33 = ssub.s32 %s20, %s27
      %s34 = sor.u32 %s32, %s33
      %p35 = scmp.eq.s32.totalorder %s34, 0
      %s37 = sadd.s32 %s36, 1
      %s38 = scalar_select %p35, %s36, %s37
      %p41 = pneg %p35
      %p42 = scmp.eq.s32.totalorder %s12, 1
      %p43 = por %p41, %p42
      %p44 = scmp.ne.s32.totalorder %s36, %s39
      %p45 = scmp.eq.s32.totalorder %s12, 0
      %p46 = por %p44, %p45
      %p47 = scmp.ne.s32.totalorder %s36, %s39
      %p48 = scmp.eq.s32.totalorder %s17, 1
      %p49 = por %p47, %p48
      %p50 = scmp.ne.s32.totalorder %s39, %s40
      %p51 = scmp.eq.s32.totalorder %s17, 0
      %p52 = por %p50, %p51
      %p53 = scmp.ne.s32.totalorder %s39, %s40
      %p54 = scmp.eq.s32.totalorder %s18, 1
      %p55 = por %p53, %p54
      %p57 = scmp.ne.s32.totalorder %s40, %s56
      %p58 = scmp.eq.s32.totalorder %s18, 0
      %p59 = por %p57, %p58
      %s60 = ssub.s32 %s19, %s31
      %p61 = scmp.eq.s32.totalorder %s60, 0
      %s63 = sadd.s32 %s62, 1
      %s64 = scalar_select %p61, %s62, %s63
      %p67 = pneg %p61
      %p68 = scmp.eq.s32.totalorder %s12, 1
      %p69 = por %p67, %p68
      %p70 = scmp.ne.s32.totalorder %s62, %s65
      %p71 = scmp.eq.s32.totalorder %s12, 0
      %p72 = por %p70, %p71
      %p73 = scmp.ne.s32.totalorder %s62, %s65
      %p74 = scmp.eq.s32.totalorder %s17, 1
      %p75 = por %p73, %p74
      %p76 = scmp.ne.s32.totalorder %s65, %s66
      %p77 = scmp.eq.s32.totalorder %s17, 0
      %p78 = por %p76, %p77
      %p79 = scmp.ne.s32.totalorder %s65, %s66
      %p80 = scmp.eq.s32.totalorder %s18, 1
      %p81 = por %p79, %p80
      %p83 = scmp.ne.s32.totalorder %s66, %s82
      %p84 = scmp.eq.s32.totalorder %s18, 0
      %p85 = por %p83, %p84
      %s86 = ssub.s32 %s19, %s31
      %p87 = scmp.eq.s32.totalorder %s86, 0
      %s89 = sadd.s32 %s88, 1
      %s90 = scalar_select %p87, %s88, %s89
      %p93 = pneg %p87
      %p94 = scmp.eq.s32.totalorder %s12, 1
      %p95 = por %p93, %p94
      %p96 = scmp.ne.s32.totalorder %s88, %s91
      %p97 = scmp.eq.s32.totalorder %s12, 0
      %p98 = por %p96, %p97
      %p99 = scmp.ne.s32.totalorder %s88, %s91
      %p100 = scmp.eq.s32.totalorder %s17, 1
      %p101 = por %p99, %p100
      %p102 = scmp.ne.s32.totalorder %s91, %s92
      %p103 = scmp.eq.s32.totalorder %s17, 0
      %p104 = por %p102, %p103
      %p105 = scmp.ne.s32.totalorder %s91, %s92
      %p106 = scmp.eq.s32.totalorder %s18, 1
      %p107 = por %p105, %p106
      %p109 = scmp.ne.s32.totalorder %s92, %s108
      %p110 = scmp.eq.s32.totalorder %s18, 0
      %p111 = por %p109, %p110
      %s112 = ssub.s32 %s19, %s31
      %s113 = ssub.s32 %s20, %s27
      %s114 = sor.u32 %s112, %s113
      %p115 = scmp.eq.s32.totalorder %s114, 0
      %s117 = sadd.s32 %s116, 1
      %s118 = scalar_select %p115, %s116, %s117
      %p121 = pneg %p115
      %p122 = scmp.eq.s32.totalorder %s12, 1
      %p123 = por %p121, %p122
      %p124 = scmp.ne.s32.totalorder %s116, %s119
      %p125 = scmp.eq.s32.totalorder %s12, 0
      %p126 = por %p124, %p125
      %p127 = scmp.ne.s32.totalorder %s116, %s119
      %p128 = scmp.eq.s32.totalorder %s17, 1
      %p129 = por %p127, %p128
      %p130 = scmp.ne.s32.totalorder %s119, %s120
      %p131 = scmp.eq.s32.totalorder %s17, 0
      %p132 = por %p130, %p131
      %p133 = scmp.ne.s32.totalorder %s119, %s120
      %p134 = scmp.eq.s32.totalorder %s18, 1
      %p135 = por %p133, %p134
      %p137 = scmp.ne.s32.totalorder %s120, %s136
      %p138 = scmp.eq.s32.totalorder %s18, 0
      %p139 = por %p137, %p138
      %p140 = scmp.le.s32.totalorder 1, %s12
      %p141 = scmp.lt.s32.totalorder %s12, 3
      %p142 = pnand %p140, %p141
      %p143 = pneg %p142
      // Predicated region
      $region9: #{tpu_custom_call.1} parent=5 // pred_check
        _
      $region10: #{tpu_custom_call.1} parent=5 // pred_check_branch
        %145 = sbr.rel (%p142) target = $region12
      $region11: #{tpu_custom_call.1} parent=5 // pred_region
        %s146 = ssub.s32 %s12, 1
      $region12: #{tpu_custom_call.1} parent=5 // pred_fallthru
        _
      %p147 = scmp.lt.s32.totalorder %s12, 2
      // Predicated region
      $region13: #{tpu_custom_call.1} parent=5 // pred_check
        %p148 = pneg %p147
      $region14: #{tpu_custom_call.1} parent=5 // pred_check_branch
        %150 = sbr.rel (%p148) target = $region16
      $region15: #{tpu_custom_call.1} parent=5 // pred_region
        // Predicated region
        $region17: #{tpu_custom_call.1} parent=15 // pred_check
          %p151 = pneg %p46
        $region18: #{tpu_custom_call.1} parent=15 // pred_check_branch
          %153 = sbr.rel (%p151) target = $region20
        $region19: #{tpu_custom_call.1} parent=15 // pred_region
          %s154 = smul.u32 2, %s20
          %p155 = scmp.lt.s32.totalorder %s19, 1
          %s156 = scalar_select %p155, %s19, 1
          %p157 = scmp.lt.s32.totalorder %s154, 1
          %s158 = scalar_select %p157, %s154, 1
          %s159 = smul.addr %s156, 2
          %s160 = sadd.s32 %s158, %s159
          %s161 = smul.addr %s160, 8
          %s162 = scalar_lea.vmem %s0, %s161
          %s163 = smul.u32 2, %s20
        $region20: #{tpu_custom_call.1} parent=15 // pred_fallthru
          _
        // Predicated region
        $region21: #{tpu_custom_call.1} parent=15 // pred_check
          %p164 = pneg %p72
        $region22: #{tpu_custom_call.1} parent=15 // pred_check_branch
          %166 = sbr.rel (%p164) target = $region24
        $region23: #{tpu_custom_call.1} parent=15 // pred_region
          %p167 = scmp.lt.s32.totalorder %s19, 1
          %s168 = scalar_select %p167, %s19, 1
          %s169 = smul.addr %s168, 2
          %s170 = smul.addr %s169, 8
          %s171 = scalar_lea.vmem %s1, %s170
        $region24: #{tpu_custom_call.1} parent=15 // pred_fallthru
          _
        // Predicated region
        $region25: #{tpu_custom_call.1} parent=15 // pred_check
          %p172 = pneg %p98
        $region26: #{tpu_custom_call.1} parent=15 // pred_check_branch
          %174 = sbr.rel (%p172) target = $region28
        $region27: #{tpu_custom_call.1} parent=15 // pred_region
          %p175 = scmp.lt.s32.totalorder %s19, 1
          %s176 = scalar_select %p175, %s19, 1
          %s177 = scalar_lea.vmem %s2, %s176
        $region28: #{tpu_custom_call.1} parent=15 // pred_fallthru
          _
      $region16: #{tpu_custom_call.1} parent=5 // pred_fallthru
        _
      %p178 = scmp.le.s32.totalorder 1, %s12
      %p179 = scmp.lt.s32.totalorder %s12, 3
      %p180 = pnand %p178, %p179
      %p181 = pneg %p180
      // Predicated region
      $region29: #{tpu_custom_call.1} parent=5 // pred_check
        _
      $region30: #{tpu_custom_call.1} parent=5 // pred_check_branch
        %183 = sbr.rel (%p180) target = $region32
      $region31: #{tpu_custom_call.1} parent=5 // pred_region
        %s184 = ssub.s32 %s12, 1
        %s185 = smul.u32 2, %s22
        %p186 = scmp.lt.s32.totalorder %s21, 1
        %s187 = scalar_select %p186, %s21, 1
        %p188 = scmp.lt.s32.totalorder %s185, 1
        %s189 = scalar_select %p188, %s185, 1
        %s190 = smul.addr %s187, 2
        %s191 = sadd.s32 %s189, %s190
        %s192 = smul.addr %s191, 8
        %s193 = scalar_lea.vmem %s0, %s192
        %p194 = pneg %p52
        %p195 = pneg %p49
        %p196 = scmp.lt.s32.totalorder %s21, 1
        %s197 = scalar_select %p196, %s21, 1
        %s198 = smul.addr %s197, 2
        %s199 = smul.addr %s198, 8
        %s200 = scalar_lea.vmem %s1, %s199
        %p201 = pneg %p78
        %p202 = pneg %p75
        %p203 = scmp.lt.s32.totalorder %s21, 1
        %s204 = scalar_select %p203, %s21, 1
        %s205 = scalar_lea.vmem %s2, %s204
        %p206 = pneg %p104
        %p207 = pneg %p101
        %p208 = pneg %p132
        %p209 = pneg %p129
        %s210 = sand.u32 %s119, 1
        %s211 = scalar_lea.sflag [#allocation3], %s210
        %s212 = sand.u32 %s119, 1
        %s213 = smul.addr %s212, 16
        %s214 = scalar_lea.vmem [#allocation2], %s213
        %s215 = smul.u32 2, %s22
        %p216 = scmp.lt.s32.totalorder %s21, 1
        %s217 = scalar_select %p216, %s21, 1
        %p218 = scmp.lt.s32.totalorder %s215, 1
        %s219 = scalar_select %p218, %s215, 1
        %s220 = smul.addr %s217, 2
        %s221 = sadd.s32 %s219, %s220
        %s222 = smul.addr %s221, 8
        %s223 = scalar_lea.vmem %s0, %s222
        %s224 = smul.u32 2, %s22
        %p225 = scmp.lt.s32.totalorder %s21, 1
        %s226 = scalar_select %p225, %s21, 1
        %s227 = smul.addr %s226, 2
        %s228 = smul.addr %s227, 8
        %s229 = scalar_lea.vmem %s1, %s228
        %p230 = scmp.lt.s32.totalorder %s21, 1
        %s231 = scalar_select %p230, %s21, 1
        %s232 = scalar_lea.vmem %s2, %s231
        %s233 = smul.u32 2, %s22
        %v234 = vld [vmem:[%s223] sm:$0xff]
        %v235 = vld [vmem:[%s223 + $0x8] sm:$0xff]
        %v236 = vld [vmem:[%s229] sm:$0xff]
        %v237 = vld [vmem:[%s229 + $0x8] sm:$0xff]
        %v238 = vmul.f32 %v234, %v234
        %v239 = vmul.f32 %v235, %v235
        %vm240 = vcmask 23552
        %v241 = vsel %vm240, %v238, 0.0
        %242 = vadd.xlane.f32.xlu0 %v241
        %v243 = vpop.xlane.xlu0 %242
        %v244 = vsel %vm240, %v239, 0.0
        %245 = vadd.xlane.f32.xlu0 %v244
        %v246 = vpop.xlane.xlu0 %245
        %v248 = vsel %vm240, %v234, 0
        %v251 = vsel %vm240, %v235, 0
        %v254 = vsel %vm240, %v236, 0
        %v257 = vsel %vm240, %v237, 0
        %259 = vmatprep.subr.mxu0 0.0
        %260 = vmatpush1.xpose.msra.mxu0 0.0
        %261 = vmatprep.subr.mxu0 0.0
        %262 = vmatpush1.xpose.msra.mxu0 0.0
        %263 = vmatprep.subr.mxu0 0.0
        %264 = vmatpush1.xpose.msra.mxu0 0.0
        %265 = vmatprep.subr.mxu0 0.0
        %266 = vmatpush1.xpose.msra.mxu0 0.0
        %267 = vmatprep.subr.mxu0 0.0
        %268 = vmatpush1.xpose.msra.mxu0 0.0
        %269 = vmatprep.subr.mxu0 0.0
        %270 = vmatpush1.xpose.msra.mxu0 0.0
        %271 = vmatprep.subr.mxu0 0.0
        %272 = vmatpush1.xpose.msra.mxu0 0.0
        %273 = vmatprep.subr.mxu0 0.0
        %274 = vmatpush1.xpose.msra.mxu0 0.0
        %275 = vmatprep.subr.mxu0 0.0
        %276 = vmatpush1.xpose.msra.mxu0 0.0
        %277 = vmatprep.subr.mxu0 0.0
        %278 = vmatpush1.xpose.msra.mxu0 0.0
        %279 = vmatprep.subr.mxu0 0.0
        %280 = vmatpush1.xpose.msra.mxu0 0.0
        %281 = vmatprep.subr.mxu0 0.0
        %282 = vmatpush1.xpose.msra.mxu0 0.0
        %283 = vmatprep.subr.mxu0 0.0
        %284 = vmatpush1.xpose.msra.mxu0 0.0
        %285 = vmatprep.subr.mxu0 0.0
        %286 = vmatpush1.xpose.msra.mxu0 0.0
        %287 = vmatprep.subr.mxu0 0.0
        %288 = vmatpush1.xpose.msra.mxu0 %v257
        %289 = vmatprep.subr.mxu0 0.0
        %290 = vmatpush1.xpose.msra.mxu0 %v254
        %291 = vmatprep.subr.mxu0 0.0
        %292 = vmatpush2.xpose.msra.mxu0 0.0
        %293 = vmatprep.subr.mxu0 0.0
        %294 = vmatpush2.xpose.msra.mxu0 0.0
        %295 = vmatprep.subr.mxu0 0.0
        %296 = vmatpush2.xpose.msra.mxu0 0.0
        %297 = vmatprep.subr.mxu0 0.0
        %298 = vmatpush2.xpose.msra.mxu0 0.0
        %299 = vmatprep.subr.mxu0 0.0
        %300 = vmatpush2.xpose.msra.mxu0 0.0
        %301 = vmatprep.subr.mxu0 0.0
        %302 = vmatpush2.xpose.msra.mxu0 0.0
        %303 = vmatprep.subr.mxu0 0.0
        %304 = vmatpush2.xpose.msra.mxu0 0.0
        %305 = vmatprep.subr.mxu0 0.0
        %306 = vmatpush2.xpose.msra.mxu0 0.0
        %307 = vmatprep.subr.mxu0 0.0
        %308 = vmatpush2.xpose.msra.mxu0 0.0
        %309 = vmatprep.subr.mxu0 0.0
        %310 = vmatpush2.xpose.msra.mxu0 0.0
        %311 = vmatprep.subr.mxu0 0.0
        %312 = vmatpush2.xpose.msra.mxu0 0.0
        %313 = vmatprep.subr.mxu0 0.0
        %314 = vmatpush2.xpose.msra.mxu0 0.0
        %315 = vmatprep.subr.mxu0 0.0
        %316 = vmatpush2.xpose.msra.mxu0 0.0
        %317 = vmatprep.subr.mxu0 0.0
        %318 = vmatpush2.xpose.msra.mxu0 0.0
        %319 = vmatprep.subr.mxu0 0.0
        %320 = vmatpush2.xpose.msra.mxu0 0.0
        %321 = vmatprep.subr.mxu0 0.0
        %322 = vmatpush2.xpose.msra.mxu0 0.0
        %323 = vmatprep.mubr.f32.mxu0 0.0
        %324 = vmatmul.mubr.f32.gmra.mxu0 %v248
        %v325 = vpop.f32.mrf.mxu0
        %v326 = vadd.f32 0.0, %v325
        %v327 = vpop.f32.mrf.mxu0
        %328 = vmatprep.mubr.f32.mxu0 0.0
        %329 = vmatmul.mubr.f32.gmra.mxu0 %v251
        %v330 = vpop.f32.mrf.mxu0
        %v331 = vadd.f32 0.0, %v330
        %v332 = vpop.f32.mrf.mxu0
        %333 = vdwg.mxu0
        %v334 = vld [vmem:[%s232] sm:$0x1]
        %v336 = vlaneseq
        %v337 = vshrl.u32 %v336, 7
        %v338 = vsub.s32 0, %v337
        %v339 = vrot.slane %v334, %v338
        %v341 = vadd.f32 %v243, %v339
        %v342 = vadd.f32 %v246, %v339
        %v343 = vmul.f32 %v326, 2.0
        %v344 = vmul.f32 %v331, 2.0
        %v345 = vsub.f32 %v341, %v343
        %v346 = vsub.f32 %v342, %v344
        %vm347 = vcmask 130048
        %348 = vst.msk [vmem:[%s214] sm:$0xff] %vm347, %v345
        %349 = vst.msk [vmem:[%s214 + $0x8] sm:$0xff] %vm347, %v346
        %s350 = sand.u32 %s119, 1
        %s351 = scalar_lea.sflag [#allocation3], %s350
        %s352 = sand.u32 %s119, 1
        %s353 = smul.addr %s352, 16
        %s354 = scalar_lea.vmem [#allocation2], %s353
        // Predicated region
        $region33: #{tpu_custom_call.1} parent=31 // pred_check
          %p355 = pneg %p129
        $region34: #{tpu_custom_call.1} parent=31 // pred_check_branch
          %357 = sbr.rel (%p355) target = $region36
        $region35: #{tpu_custom_call.1} parent=31 // pred_region
          %s358 = smul.u32 2, %s22
          %s360 = ssub.s32 256, 256
          %361 = vsyncadd %s351, %s360
          %s362 = smul.addr %s21, 2
          %s363 = sadd.s32 %s358, %s362
          %s364 = smul.addr %s363, 128
          %s365 = scalar_lea.hbm %s3, %s364
          %s366 = sshll.u32 %s354, 4
          %s367 = int_to_ptr.vmem [resolvable:$true] %s366
          %372 = dma.vmem_to_hbm [thread:$0]  %s367, 256, %s365, %s351, 128, 128, 8
        $region36: #{tpu_custom_call.1} parent=31 // pred_fallthru
          _
      $region32: #{tpu_custom_call.1} parent=5 // pred_fallthru
        _
      %p373 = scmp.le.s32.totalorder 2, %s12
      // Predicated region
      $region37: #{tpu_custom_call.1} parent=5 // pred_check
        %p374 = pneg %p373
      $region38: #{tpu_custom_call.1} parent=5 // pred_check_branch
        %376 = sbr.rel (%p374) target = $region40
      $region39: #{tpu_custom_call.1} parent=5 // pred_region
        %s377 = ssub.s32 %s12, 2
        // Predicated region
        $region41: #{tpu_custom_call.1} parent=39 // pred_check
          %p378 = pneg %p135
        $region42: #{tpu_custom_call.1} parent=39 // pred_check_branch
          %380 = sbr.rel (%p378) target = $region44
        $region43: #{tpu_custom_call.1} parent=39 // pred_region
          %s381 = sand.u32 %s120, 1
          %s382 = scalar_lea.sflag [#allocation3], %s381
          %s383 = sand.u32 %s120, 1
          %s384 = smul.addr %s383, 16
          %s385 = scalar_lea.vmem [#allocation2], %s384
          %386 = dma.done %s382, 256
        $region44: #{tpu_custom_call.1} parent=39 // pred_fallthru
          _
      $region40: #{tpu_custom_call.1} parent=5 // pred_fallthru
        _
    $region6: #{tpu_custom_call.1} parent=1 // loop_footer
      %s16 = sadd.s32 1, %s12
    $region7: #{tpu_custom_call.1} parent=1 // loop_footer_branch
      %11 = sbr.rel target = $region3
    $region8: #{tpu_custom_call.1} parent=1 // loop_exit
      _
    %387 = vsyncpa [#allocation3], 1
    %s388 = scalar_lea.sflag [#allocation3], 1
    %389 = vsyncpa %s388, 1

</llo_original>
